<compile_context>
chip_gen: v7x
topology: tpu7x:2x2x1
jax: 0.10.0
libtpu: 0.0.40
codegen_flags: <defaults>
</compile_context>

<pallas_src>
import functools
import math

import jax
import jax.numpy as jnp
from jax.experimental import pallas as pl
from jax.experimental.pallas import tpu as pltpu


def _round_up(n, m):
    return ((n + m - 1) // m) * m


def _cdiv(a, b):
    return -(-a // b)


def _mlp_fused_kernel(x_ref, *refs, num_layers, activation):
    """Fused MLP body. refs = (w0, b0, w1, b1, ..., w_{L-1}, b_{L-1}, o_ref)."""
    o_ref = refs[2 * num_layers]
    h = x_ref[...]
    for i in range(num_layers):
        w = refs[2 * i][...]
        b = refs[2 * i + 1][...]
        h = jnp.dot(h, w, preferred_element_type=jnp.float32) + b
        if activation == "tanh":
            h = jnp.tanh(h)
        elif activation == "relu":
            h = jnp.maximum(h, 0.0)
        else:  # sigmoid
            h = jax.nn.sigmoid(h)
    o_ref[...] = h.astype(o_ref.dtype)


def _vmem_estimate_bytes(batch_tile, cin, padded_params, cout):
    """Generous estimate of VMEM use (everything double-buffered) in bytes."""
    f32 = 4
    est = 2 * batch_tile * cin * f32 + 2 * batch_tile * cout * f32  # x / out tiles
    widths = [cin]
    for w, b in padded_params:
        est += 2 * (w.size + b.size) * f32          # resident weight/bias buffers
        widths.append(w.shape[1])
    est += 2 * batch_tile * max(widths) * f32       # live intermediate activations
    return est


def fused_mlp(x_rows, padded_params, activation, batch_tile):
    """Run the whole MLP in one pallas_call.

    x_rows: (B_pad, cin) with B_pad % batch_tile == 0 (cin at its real width).
    padded_params: list of (w, b); only *internal* feature dims are 128-padded,
      the first contraction dim and the final output dim are real widths.
    """
    b_pad, cin = x_rows.shape
    num_layers = len(padded_params)
    cout = padded_params[-1][0].shape[1]
    assert b_pad % batch_tile == 0

    vmem = pltpu.MemorySpace.VMEM

    # x: tiled along batch; feature dim is the full array dim (no padding).
    in_specs = [
        pl.BlockSpec((batch_tile, cin), lambda i: (i, 0), memory_space=vmem)
    ]
    flat_inputs = [x_rows]
    # Weights / biases: full-extent blocks, resident across all grid steps.
    for w, bias in padded_params:
        ci, co = w.shape
        in_specs.append(
            pl.BlockSpec((ci, co), lambda i: (0, 0), memory_space=vmem))
        in_specs.append(
            pl.BlockSpec((1, co), lambda i: (0, 0), memory_space=vmem))
        flat_inputs.append(w)
        flat_inputs.append(bias)

    # Output at its real width: for small cout a masked store beats an
    # 8x-padded HBM write plus a post-hoc slice kernel.
    out_spec = pl.BlockSpec(
        (batch_tile, cout), lambda i: (i, 0), memory_space=vmem)

    kernel = functools.partial(
        _mlp_fused_kernel, num_layers=num_layers, activation=activation)

    # Explicit scoped-VMEM budget: covers v5e's 16 MiB / v7x's 32 MiB scoped
    # defaults if tiles or layer widths grow, while staying well under v7x's
    # 64 MiB physical VMEM.
    est = _vmem_estimate_bytes(batch_tile, cin, padded_params, cout)
    vmem_limit = min(max(2 * est + (4 << 20), 16 << 20), 48 << 20)

    return pl.pallas_call(
        kernel,
        out_shape=jax.ShapeDtypeStruct((b_pad, cout), x_rows.dtype),
        grid=(b_pad // batch_tile,),
        in_specs=in_specs,
        out_specs=out_spec,
        compiler_params=pltpu.CompilerParams(
            # Batch tiles are independent -> shard across TensorCores on v7x.
            dimension_semantics=("parallel",),
            vmem_limit_bytes=int(vmem_limit),
        ),
    )(*flat_inputs)


class DataNN:
    """JAX/Pallas port of the PyTorch DataNN MLP (forward pass)."""

    # Rows per grid step for large batches.  512-1024-row tiles reach ~85% of
    # the HBM roofline (vs ~63% at 256) and amortize the ~0.35 us/step cost;
    # at tile*128 f32 that is only ~0.25 MiB per x buffer.
    DEFAULT_BATCH_TILE = 512
    MIN_TILE = 8  # sublane granule

    def __init__(self, channels, activation="tanh", seed=123):
        if activation not in ("tanh", "relu", "sigmoid"):
            raise NotImplementedError(activation)
        self.activation = activation
        self.channels = list(channels)
        self.num_hidden = len(channels) - 1

        key = jax.random.PRNGKey(seed)
        self.params = []          # unpadded (w, b) — used by the JAX reference
        self.padded_params = []   # kernel inputs (internal dims 128-padded)
        for i in range(self.num_hidden):
            fan_in, fan_out = channels[i], channels[i + 1]
            key, kw, kb = jax.random.split(key, 3)
            # PyTorch nn.Linear default init: U(-1/sqrt(fan_in), 1/sqrt(fan_in)).
            bound = 1.0 / math.sqrt(fan_in)
            w = jax.random.uniform(
                kw, (fan_in, fan_out), jnp.float32, minval=-bound, maxval=bound)
            b = jax.random.uniform(
                kb, (fan_out,), jnp.float32, minval=-bound, maxval=bound)
            self.params.append((w, b))

            # Pad ONLY internal feature dims to 128 (lane-dense intermediate
            # matmuls, zero pad => exact).  The first contraction dim and the
            # final output dim stay at their real widths so x and the output
            # are never inflated in HBM.
            ci_pad = fan_in if i == 0 else _round_up(fan_in, 128)
            co_pad = fan_out if i == self.num_hidden - 1 else _round_up(fan_out, 128)
            w_pad = jnp.zeros((ci_pad, co_pad), jnp.float32)
            w_pad = w_pad.at[:fan_in, :fan_out].set(w)
            b_pad = jnp.zeros((1, co_pad), jnp.float32)
            b_pad = b_pad.at[0, :fan_out].set(b)
            self.padded_params.append((w_pad, b_pad))

    def _choose_batch_tiling(self, B):
        """Pick (tile, padded_batch) with <=7 wasted rows per grid step and an
        even, >=2-step grid once the batch is worth splitting (v7x megacore)."""
        n_steps = max(1, _cdiv(B, self.DEFAULT_BATCH_TILE))
        if B >= 2 * self.MIN_TILE:
            n_steps = max(n_steps, 2)
        if n_steps > 1 and n_steps % 2 == 1:
            n_steps += 1
        tile = _round_up(_cdiv(B, n_steps), self.MIN_TILE)
        return tile, tile * n_steps

    def __call__(self, x):
        B, cin = x.shape
        assert cin == self.channels[0]

        tile, b_pad = self._choose_batch_tiling(B)

        # Row padding only when the batch doesn't divide the tile (<=7/step).
        if b_pad != B:
            x_in = jnp.pad(x, ((0, b_pad - B), (0, 0)))
        else:
            x_in = x

        y = fused_mlp(x_in, self.padded_params, self.activation, tile)
        return y if b_pad == B else y[:B]

    def reference(self, x):
        """Plain-JAX reference for verification (unpadded params)."""
        act = {"tanh": jnp.tanh,
               "relu": lambda v: jnp.maximum(v, 0.0),
               "sigmoid": jax.nn.sigmoid}[self.activation]
        for w, b in self.params:
            x = act(x @ w + b)
        return x


if __name__ == "__main__":
    channels = [32, 64, 64, 16]   # MLP widths (len(channels)-1 linear layers)
    batch = 8

    model = DataNN(channels, activation="tanh", seed=123)

    key = jax.random.PRNGKey(0)
    x = jax.random.normal(key, (batch, channels[0]), dtype=jnp.float32)

    out = model(x)
    out = jax.block_until_ready(out)

    ref = model.reference(x)
    assert out.shape == (batch, channels[-1])
    assert jnp.allclose(out, ref, atol=1e-5, rtol=1e-5)

    # Extra check: non-divisible batch exercises the row-padding + 2-step grid.
    x2 = jax.random.normal(jax.random.PRNGKey(1), (20, channels[0]), jnp.float32)
    out2 = jax.block_until_ready(model(x2))
    assert out2.shape == (20, channels[-1])
    assert jnp.allclose(out2, model.reference(x2), atol=1e-5, rtol=1e-5)

    print("KERNEL_OK")
</pallas_src>

<mosaic_0001>
module attributes {stable_mosaic.version = 11 : i64} {
  func.func @_mlp_fused_kernel(%arg0: i32, %arg1: memref<8x32xf32, #tpu.memory_space<vmem>>, %arg2: memref<32x128xf32, #tpu.memory_space<vmem>>, %arg3: memref<1x128xf32, #tpu.memory_space<vmem>>, %arg4: memref<128x128xf32, #tpu.memory_space<vmem>>, %arg5: memref<1x128xf32, #tpu.memory_space<vmem>>, %arg6: memref<128x16xf32, #tpu.memory_space<vmem>>, %arg7: memref<1x16xf32, #tpu.memory_space<vmem>>, %arg8: memref<8x16xf32, #tpu.memory_space<vmem>>) attributes {dimension_semantics = [#tpu.dimension_semantics<parallel>], iteration_bounds = array<i64: 1>, scalar_prefetch = 0 : i64, scratch_operands = 0 : i64, tpu.core_type = #tpu.core_type<tc>, window_params = [{transform_indices = @transform_0, window_bounds = array<i64: 8, 32>}, {pipeline_mode = #tpu.pipeline_mode<synchronous>, transform_indices = @transform_1, window_bounds = array<i64: 32, 128>}, {pipeline_mode = #tpu.pipeline_mode<synchronous>, transform_indices = @transform_2, window_bounds = array<i64: 1, 128>}, {pipeline_mode = #tpu.pipeline_mode<synchronous>, transform_indices = @transform_3, window_bounds = array<i64: 128, 128>}, {pipeline_mode = #tpu.pipeline_mode<synchronous>, transform_indices = @transform_4, window_bounds = array<i64: 1, 128>}, {pipeline_mode = #tpu.pipeline_mode<synchronous>, transform_indices = @transform_5, window_bounds = array<i64: 128, 16>}, {pipeline_mode = #tpu.pipeline_mode<synchronous>, transform_indices = @transform_6, window_bounds = array<i64: 1, 16>}, {transform_indices = @transform_7, window_bounds = array<i64: 8, 16>}]} {
    %c0 = arith.constant 0 : index
    %c0_0 = arith.constant 0 : index
    %0 = vector.load %arg1[%c0, %c0_0] : memref<8x32xf32, #tpu.memory_space<vmem>>, vector<8x32xf32>
    %c0_1 = arith.constant 0 : index
    %c0_2 = arith.constant 0 : index
    %1 = vector.load %arg2[%c0_1, %c0_2] : memref<32x128xf32, #tpu.memory_space<vmem>>, vector<32x128xf32>
    %c0_3 = arith.constant 0 : index
    %c0_4 = arith.constant 0 : index
    %2 = vector.load %arg3[%c0_3, %c0_4] : memref<1x128xf32, #tpu.memory_space<vmem>>, vector<1x128xf32>
    %cst = arith.constant dense<0.000000e+00> : vector<8x128xf32>
    %3 = tpu.matmul %0, %1, %cst {dimension_numbers = #tpu.dot_dimension_numbers<[1], [0], [0], [1], [0, 0, 1, 1], [], []>} : vector<8x32xf32>, vector<32x128xf32>, vector<8x128xf32> -> vector<8x128xf32>
    %4 = vector.broadcast %2 : vector<1x128xf32> to vector<8x128xf32>
    %5 = arith.addf %3, %4 : vector<8x128xf32>
    %6 = math.tanh %5 : vector<8x128xf32>
    %c0_5 = arith.constant 0 : index
    %c0_6 = arith.constant 0 : index
    %7 = vector.load %arg4[%c0_5, %c0_6] : memref<128x128xf32, #tpu.memory_space<vmem>>, vector<128x128xf32>
    %c0_7 = arith.constant 0 : index
    %c0_8 = arith.constant 0 : index
    %8 = vector.load %arg5[%c0_7, %c0_8] : memref<1x128xf32, #tpu.memory_space<vmem>>, vector<1x128xf32>
    %cst_9 = arith.constant dense<0.000000e+00> : vector<8x128xf32>
    %9 = tpu.matmul %6, %7, %cst_9 {dimension_numbers = #tpu.dot_dimension_numbers<[1], [0], [0], [1], [0, 0, 1, 1], [], []>} : vector<8x128xf32>, vector<128x128xf32>, vector<8x128xf32> -> vector<8x128xf32>
    %10 = vector.broadcast %8 : vector<1x128xf32> to vector<8x128xf32>
    %11 = arith.addf %9, %10 : vector<8x128xf32>
    %12 = math.tanh %11 : vector<8x128xf32>
    %c0_10 = arith.constant 0 : index
    %c0_11 = arith.constant 0 : index
    %13 = vector.load %arg6[%c0_10, %c0_11] : memref<128x16xf32, #tpu.memory_space<vmem>>, vector<128x16xf32>
    %c0_12 = arith.constant 0 : index
    %c0_13 = arith.constant 0 : index
    %14 = vector.load %arg7[%c0_12, %c0_13] : memref<1x16xf32, #tpu.memory_space<vmem>>, vector<1x16xf32>
    %cst_14 = arith.constant dense<0.000000e+00> : vector<8x16xf32>
    %15 = tpu.matmul %12, %13, %cst_14 {dimension_numbers = #tpu.dot_dimension_numbers<[1], [0], [0], [1], [0, 0, 1, 1], [], []>} : vector<8x128xf32>, vector<128x16xf32>, vector<8x16xf32> -> vector<8x16xf32>
    %16 = vector.broadcast %14 : vector<1x16xf32> to vector<8x16xf32>
    %17 = arith.addf %15, %16 : vector<8x16xf32>
    %18 = math.tanh %17 : vector<8x16xf32>
    %c0_15 = arith.constant 0 : index
    %c0_16 = arith.constant 0 : index
    %19 = vector.load %arg8[%c0_15, %c0_16] : memref<8x16xf32, #tpu.memory_space<vmem>>, vector<8x16xf32>
    tpu.vector_store %arg8[%c0_15, %c0_16], %18 {strides = array<i32>} : memref<8x16xf32, #tpu.memory_space<vmem>>, vector<8x16xf32>,
    return
  }
  func.func @transform_0(%arg0: i32) -> (i32, i32) {
    %c0_i32 = arith.constant 0 : i32
    %c0_i32_0 = arith.constant 0 : i32
    return %arg0, %c0_i32 : i32, i32
  }
  func.func @transform_1(%arg0: i32) -> (i32, i32) {
    %c0_i32 = arith.constant 0 : i32
    %c0_i32_0 = arith.constant 0 : i32
    %c0_i32_1 = arith.constant 0 : i32
    return %c0_i32, %c0_i32_0 : i32, i32
  }
  func.func @transform_2(%arg0: i32) -> (i32, i32) {
    %c0_i32 = arith.constant 0 : i32
    %c0_i32_0 = arith.constant 0 : i32
    %c0_i32_1 = arith.constant 0 : i32
    return %c0_i32, %c0_i32_0 : i32, i32
  }
  func.func @transform_3(%arg0: i32) -> (i32, i32) {
    %c0_i32 = arith.constant 0 : i32
    %c0_i32_0 = arith.constant 0 : i32
    %c0_i32_1 = arith.constant 0 : i32
    return %c0_i32, %c0_i32_0 : i32, i32
  }
  func.func @transform_4(%arg0: i32) -> (i32, i32) {
    %c0_i32 = arith.constant 0 : i32
    %c0_i32_0 = arith.constant 0 : i32
    %c0_i32_1 = arith.constant 0 : i32
    return %c0_i32, %c0_i32_0 : i32, i32
  }
  func.func @transform_5(%arg0: i32) -> (i32, i32) {
    %c0_i32 = arith.constant 0 : i32
    %c0_i32_0 = arith.constant 0 : i32
    %c0_i32_1 = arith.constant 0 : i32
    return %c0_i32, %c0_i32_0 : i32, i32
  }
  func.func @transform_6(%arg0: i32) -> (i32, i32) {
    %c0_i32 = arith.constant 0 : i32
    %c0_i32_0 = arith.constant 0 : i32
    %c0_i32_1 = arith.constant 0 : i32
    return %c0_i32, %c0_i32_0 : i32, i32
  }
  func.func @transform_7(%arg0: i32) -> (i32, i32) {
    %c0_i32 = arith.constant 0 : i32
    %c0_i32_0 = arith.constant 0 : i32
    return %arg0, %c0_i32 : i32, i32
  }
}

</mosaic_0001>

<llo_original>
// kernel: tpu_custom_call.1
$region0: #{tpu_custom_call.1}
  #allocation0 [shape = 'u32[]', space=smem, size = 0x4, offset = 0x4, fixed_abs, tag = 'smem constant byte address 0x4 - core index']
  #allocation1 [shape = 'u32[144,128]{1,0:T(1,128)}', space=vmem, size = 0x12000, scoped, tag = 'internal scratch']
  %s0 = inlined_call_operand.vmem [shape: f32[8,32], index: 0, kind: input, shape index: {}]
  %s1 = inlined_call_operand.hbm [shape: f32[32,128], index: 1, kind: input, shape index: {}]
  %s2 = inlined_call_operand.vmem [shape: f32[1,128], index: 2, kind: input, shape index: {}]
  %s3 = inlined_call_operand.vmem [shape: f32[128,128], index: 3, kind: input, shape index: {}]
  %s4 = inlined_call_operand.vmem [shape: f32[1,128], index: 4, kind: input, shape index: {}]
  %s5 = inlined_call_operand.vmem [shape: f32[128,16], index: 5, kind: input, shape index: {}]
  %s6 = inlined_call_operand.vmem [shape: f32[1,16], index: 6, kind: input, shape index: {}]
  %s7 = inlined_call_operand.hbm [shape: f32[8,16], index: 7, kind: output, shape index: {}]
  %s8 = sld [smem:[#allocation0]]
  $region42: #{tpu_custom_call.1} parent=0
    _
  %s10 = ssub.s32 1, %s8
  %s11 = scalar_select 0, %s10, %s8
  $region1: #{tpu_custom_call.1} parent=0
    #allocation2 [shape = 'u8[16384]{0}', space=vmem, size = 0x4000, scoped, tag = 'input window, operand 1, single buffered']
    #allocation3 [shape = 's32[1]{0}', space=sflag, size = 0x4, scoped, tag = 'scoped memory for tpu_custom_call.1']
    #allocation4 [shape = 's32[1]{0}', space=sflag, size = 0x4, scoped, tag = 'scoped memory for tpu_custom_call.1']
    #allocation5 [shape = 'u8[4096]{0}', space=vmem, size = 0x1000, scoped, tag = 'output window, operand 0, single buffered']
    %12 = vsyncpa [#allocation3], 0
    %13 = vsyncpa [#allocation4], 0
    // Predicated region
    $region2: #{tpu_custom_call.1} parent=1 // pred_check
      _
    $region3: #{tpu_custom_call.1} parent=1 // pred_check_branch
      %15 = sbr.rel (0) target = $region5
    $region4: #{tpu_custom_call.1} parent=1 // pred_region
      _
    $region5: #{tpu_custom_call.1} parent=1 // pred_fallthru
      _
    // Predicated region
    $region6: #{tpu_custom_call.1} parent=1 // pred_check
      _
    $region7: #{tpu_custom_call.1} parent=1 // pred_check_branch
      %17 = sbr.rel (0) target = $region9
    $region8: #{tpu_custom_call.1} parent=1 // pred_region
      %s19 = ssub.s32 512, 512
      %20 = vsyncadd [#allocation3], %s19
      %s21 = sshll.u32 [#allocation2], 4
      %s22 = int_to_ptr.vmem [resolvable:$true] %s21
      %27 = dma.hbm_to_vmem [thread:$0]  %s1, 512, %s22, [#allocation3], 128, 128, 8
    $region9: #{tpu_custom_call.1} parent=1 // pred_fallthru
      _
    // Predicated region
    $region10: #{tpu_custom_call.1} parent=1 // pred_check
      _
    $region11: #{tpu_custom_call.1} parent=1 // pred_check_branch
      %29 = sbr.rel (0) target = $region13
    $region12: #{tpu_custom_call.1} parent=1 // pred_region
      _
    $region13: #{tpu_custom_call.1} parent=1 // pred_fallthru
      _
    // Predicated region
    $region14: #{tpu_custom_call.1} parent=1 // pred_check
      _
    $region15: #{tpu_custom_call.1} parent=1 // pred_check_branch
      %31 = sbr.rel (0) target = $region17
    $region16: #{tpu_custom_call.1} parent=1 // pred_region
      _
    $region17: #{tpu_custom_call.1} parent=1 // pred_fallthru
      _
    // Predicated region
    $region18: #{tpu_custom_call.1} parent=1 // pred_check
      _
    $region19: #{tpu_custom_call.1} parent=1 // pred_check_branch
      %33 = sbr.rel (0) target = $region21
    $region20: #{tpu_custom_call.1} parent=1 // pred_region
      _
    $region21: #{tpu_custom_call.1} parent=1 // pred_fallthru
      _
    // Predicated region
    $region22: #{tpu_custom_call.1} parent=1 // pred_check
      _
    $region23: #{tpu_custom_call.1} parent=1 // pred_check_branch
      %35 = sbr.rel (0) target = $region25
    $region24: #{tpu_custom_call.1} parent=1 // pred_region
      _
    $region25: #{tpu_custom_call.1} parent=1 // pred_fallthru
      _
    // Predicated region
    $region26: #{tpu_custom_call.1} parent=1 // pred_check
      _
    $region27: #{tpu_custom_call.1} parent=1 // pred_check_branch
      %37 = sbr.rel (0) target = $region29
    $region28: #{tpu_custom_call.1} parent=1 // pred_region
      _
    $region29: #{tpu_custom_call.1} parent=1 // pred_fallthru
      _
    // Predicated region
    $region30: #{tpu_custom_call.1} parent=1 // pred_check
      _
    $region31: #{tpu_custom_call.1} parent=1 // pred_check_branch
      %39 = sbr.rel (0) target = $region33
    $region32: #{tpu_custom_call.1} parent=1 // pred_region
      %40 = dma.done [#allocation3], 512
    $region33: #{tpu_custom_call.1} parent=1 // pred_fallthru
      _
    %v41 = vld [vmem:[%s0] sm:$0xff]
    %v42 = vld [vmem:[#allocation2] sm:$0xff]
    %v43 = vld [vmem:[#allocation2 + $0x8] sm:$0xff]
    %v44 = vld [vmem:[#allocation2 + $0x10] sm:$0xff]
    %v45 = vld [vmem:[#allocation2 + $0x18] sm:$0xff]
    %v46 = vld [vmem:[%s2] sm:$0x1]
    %v48 = vlaneseq
    %v49 = vshrl.u32 %v48, 7
    %v50 = vsub.s32 0, %v49
    %v51 = vrot.slane %v46, %v50
    %vm53 = vcmask 261120
    %v55 = vsel %vm53, %v41, 0
    %57 = vmatprep.subr.mxu0 0.0
    %58 = vmatpush1.msra.mxu0 %v42
    %59 = vmatprep.subr.mxu0 0.0
    %60 = vmatpush1.msra.mxu0 %v43
    %61 = vmatprep.subr.mxu0 0.0
    %62 = vmatpush1.msra.mxu0 %v44
    %63 = vmatprep.subr.mxu0 0.0
    %64 = vmatpush1.msra.mxu0 %v45
    %65 = vmatprep.subr.mxu0 0.0
    %66 = vmatpush1.msra.mxu0 0.0
    %67 = vmatprep.subr.mxu0 0.0
    %68 = vmatpush1.msra.mxu0 0.0
    %69 = vmatprep.subr.mxu0 0.0
    %70 = vmatpush1.msra.mxu0 0.0
    %71 = vmatprep.subr.mxu0 0.0
    %72 = vmatpush1.msra.mxu0 0.0
    %73 = vmatprep.subr.mxu0 0.0
    %74 = vmatpush1.msra.mxu0 0.0
    %75 = vmatprep.subr.mxu0 0.0
    %76 = vmatpush1.msra.mxu0 0.0
    %77 = vmatprep.subr.mxu0 0.0
    %78 = vmatpush1.msra.mxu0 0.0
    %79 = vmatprep.subr.mxu0 0.0
    %80 = vmatpush1.msra.mxu0 0.0
    %81 = vmatprep.subr.mxu0 0.0
    %82 = vmatpush1.msra.mxu0 0.0
    %83 = vmatprep.subr.mxu0 0.0
    %84 = vmatpush1.msra.mxu0 0.0
    %85 = vmatprep.subr.mxu0 0.0
    %86 = vmatpush1.msra.mxu0 0.0
    %87 = vmatprep.subr.mxu0 0.0
    %88 = vmatpush1.msra.mxu0 0.0
    %89 = vmatprep.subr.mxu0 0.0
    %90 = vmatpush1.msra.mxu0 0.0
    %91 = vmatprep.subr.mxu0 0.0
    %92 = vmatpush1.msra.mxu0 0.0
    %93 = vmatprep.subr.mxu0 0.0
    %94 = vmatpush1.msra.mxu0 0.0
    %95 = vmatprep.subr.mxu0 0.0
    %96 = vmatpush1.msra.mxu0 0.0
    %97 = vmatprep.subr.mxu0 0.0
    %98 = vmatpush1.msra.mxu0 0.0
    %99 = vmatprep.subr.mxu0 0.0
    %100 = vmatpush1.msra.mxu0 0.0
    %101 = vmatprep.subr.mxu0 0.0
    %102 = vmatpush1.msra.mxu0 0.0
    %103 = vmatprep.subr.mxu0 0.0
    %104 = vmatpush1.msra.mxu0 0.0
    %105 = vmatprep.subr.mxu0 0.0
    %106 = vmatpush1.msra.mxu0 0.0
    %107 = vmatprep.subr.mxu0 0.0
    %108 = vmatpush1.msra.mxu0 0.0
    %109 = vmatprep.subr.mxu0 0.0
    %110 = vmatpush1.msra.mxu0 0.0
    %111 = vmatprep.subr.mxu0 0.0
    %112 = vmatpush1.msra.mxu0 0.0
    %113 = vmatprep.subr.mxu0 0.0
    %114 = vmatpush1.msra.mxu0 0.0
    %115 = vmatprep.subr.mxu0 0.0
    %116 = vmatpush1.msra.mxu0 0.0
    %117 = vmatprep.subr.mxu0 0.0
    %118 = vmatpush1.msra.mxu0 0.0
    %119 = vmatprep.subr.mxu0 0.0
    %120 = vmatpush1.msra.mxu0 0.0
    %121 = vmatprep.mubr.f32.mxu0 0.0
    %122 = vmatmul.mubr.f32.gmra.mrb[0].mxu0 %v55
    %v123 = vpop.f32.mrb[0].mxu0
    %v124 = vadd.f32 %v51, %v123
    %v125 = vpop.f32.mrb[0].mxu0
    %126 = vdwg.mxu0
    %v127 = vtanh.pop %v124
    %v128 = vld [vmem:[%s3] sm:$0xff]
    %v129 = vld [vmem:[%s3 + $0x8] sm:$0xff]
    %v130 = vld [vmem:[%s3 + $0x10] sm:$0xff]
    %v131 = vld [vmem:[%s3 + $0x18] sm:$0xff]
    %v132 = vld [vmem:[%s3 + $0x20] sm:$0xff]
    %v133 = vld [vmem:[%s3 + $0x28] sm:$0xff]
    %v134 = vld [vmem:[%s3 + $0x30] sm:$0xff]
    %v135 = vld [vmem:[%s3 + $0x38] sm:$0xff]
    %v136 = vld [vmem:[%s3 + $0x40] sm:$0xff]
    %v137 = vld [vmem:[%s3 + $0x48] sm:$0xff]
    %v138 = vld [vmem:[%s3 + $0x50] sm:$0xff]
    %v139 = vld [vmem:[%s3 + $0x58] sm:$0xff]
    %v140 = vld [vmem:[%s3 + $0x60] sm:$0xff]
    %v141 = vld [vmem:[%s3 + $0x68] sm:$0xff]
    %v142 = vld [vmem:[%s3 + $0x70] sm:$0xff]
    %v143 = vld [vmem:[%s3 + $0x78] sm:$0xff]
    %v144 = vld [vmem:[%s4] sm:$0x1]
    %v146 = vlaneseq
    %v147 = vshrl.u32 %v146, 7
    %v148 = vsub.s32 0, %v147
    %v149 = vrot.slane %v144, %v148
    %151 = vmatprep.subr.mxu0 0.0
    %152 = vmatpush1.msra.mxu0 %v128
    %153 = vmatprep.subr.mxu0 0.0
    %154 = vmatpush1.msra.mxu0 %v129
    %155 = vmatprep.subr.mxu0 0.0
    %156 = vmatpush1.msra.mxu0 %v130
    %157 = vmatprep.subr.mxu0 0.0
    %158 = vmatpush1.msra.mxu0 %v131
    %159 = vmatprep.subr.mxu0 0.0
    %160 = vmatpush1.msra.mxu0 %v132
    %161 = vmatprep.subr.mxu0 0.0
    %162 = vmatpush1.msra.mxu0 %v133
    %163 = vmatprep.subr.mxu0 0.0
    %164 = vmatpush1.msra.mxu0 %v134
    %165 = vmatprep.subr.mxu0 0.0
    %166 = vmatpush1.msra.mxu0 %v135
    %167 = vmatprep.subr.mxu0 0.0
    %168 = vmatpush1.msra.mxu0 %v136
    %169 = vmatprep.subr.mxu0 0.0
    %170 = vmatpush1.msra.mxu0 %v137
    %171 = vmatprep.subr.mxu0 0.0
    %172 = vmatpush1.msra.mxu0 %v138
    %173 = vmatprep.subr.mxu0 0.0
    %174 = vmatpush1.msra.mxu0 %v139
    %175 = vmatprep.subr.mxu0 0.0
    %176 = vmatpush1.msra.mxu0 %v140
    %177 = vmatprep.subr.mxu0 0.0
    %178 = vmatpush1.msra.mxu0 %v141
    %179 = vmatprep.subr.mxu0 0.0
    %180 = vmatpush1.msra.mxu0 %v142
    %181 = vmatprep.subr.mxu0 0.0
    %182 = vmatpush1.msra.mxu0 %v143
    %183 = vmatprep.subr.mxu0 0.0
    %184 = vmatpush1.msra.mxu0 0.0
    %185 = vmatprep.subr.mxu0 0.0
    %186 = vmatpush1.msra.mxu0 0.0
    %187 = vmatprep.subr.mxu0 0.0
    %188 = vmatpush1.msra.mxu0 0.0
    %189 = vmatprep.subr.mxu0 0.0
    %190 = vmatpush1.msra.mxu0 0.0
    %191 = vmatprep.subr.mxu0 0.0
    %192 = vmatpush1.msra.mxu0 0.0
    %193 = vmatprep.subr.mxu0 0.0
    %194 = vmatpush1.msra.mxu0 0.0
    %195 = vmatprep.subr.mxu0 0.0
    %196 = vmatpush1.msra.mxu0 0.0
    %197 = vmatprep.subr.mxu0 0.0
    %198 = vmatpush1.msra.mxu0 0.0
    %199 = vmatprep.subr.mxu0 0.0
    %200 = vmatpush1.msra.mxu0 0.0
    %201 = vmatprep.subr.mxu0 0.0
    %202 = vmatpush1.msra.mxu0 0.0
    %203 = vmatprep.subr.mxu0 0.0
    %204 = vmatpush1.msra.mxu0 0.0
    %205 = vmatprep.subr.mxu0 0.0
    %206 = vmatpush1.msra.mxu0 0.0
    %207 = vmatprep.subr.mxu0 0.0
    %208 = vmatpush1.msra.mxu0 0.0
    %209 = vmatprep.subr.mxu0 0.0
    %210 = vmatpush1.msra.mxu0 0.0
    %211 = vmatprep.subr.mxu0 0.0
    %212 = vmatpush1.msra.mxu0 0.0
    %213 = vmatprep.subr.mxu0 0.0
    %214 = vmatpush1.msra.mxu0 0.0
    %215 = vmatprep.mubr.f32.mxu0 0.0
    %216 = vmatmul.mubr.f32.gmra.mrb[0].mxu0 %v127
    %v217 = vpop.f32.mrb[0].mxu0
    %v218 = vadd.f32 %v149, %v217
    %v219 = vpop.f32.mrb[0].mxu0
    %220 = vdwg.mxu0
    %v221 = vtanh.pop %v218
    %v222 = vld [vmem:[%s5] sm:$0xff]
    %v223 = vld [vmem:[%s5 + $0x8] sm:$0xff]
    %v224 = vld [vmem:[%s5 + $0x10] sm:$0xff]
    %v225 = vld [vmem:[%s5 + $0x18] sm:$0xff]
    %v226 = vld [vmem:[%s5 + $0x20] sm:$0xff]
    %v227 = vld [vmem:[%s5 + $0x28] sm:$0xff]
    %v228 = vld [vmem:[%s5 + $0x30] sm:$0xff]
    %v229 = vld [vmem:[%s5 + $0x38] sm:$0xff]
    %v230 = vld [vmem:[%s5 + $0x40] sm:$0xff]
    %v231 = vld [vmem:[%s5 + $0x48] sm:$0xff]
    %v232 = vld [vmem:[%s5 + $0x50] sm:$0xff]
    %v233 = vld [vmem:[%s5 + $0x58] sm:$0xff]
    %v234 = vld [vmem:[%s5 + $0x60] sm:$0xff]
    %v235 = vld [vmem:[%s5 + $0x68] sm:$0xff]
    %v236 = vld [vmem:[%s5 + $0x70] sm:$0xff]
    %v237 = vld [vmem:[%s5 + $0x78] sm:$0xff]
    %v238 = vld [vmem:[%s6] sm:$0x1]
    %v240 = vlaneseq
    %v241 = vshrl.u32 %v240, 7
    %v242 = vsub.s32 0, %v241
    %v243 = vrot.slane %v238, %v242
    %245 = vmatprep.subr.mxu0 0.0
    %246 = vmatpush1.msra.mxu0 %v222
    %247 = vmatprep.subr.mxu0 0.0
    %248 = vmatpush1.msra.mxu0 %v223
    %249 = vmatprep.subr.mxu0 0.0
    %250 = vmatpush1.msra.mxu0 %v224
    %251 = vmatprep.subr.mxu0 0.0
    %252 = vmatpush1.msra.mxu0 %v225
    %253 = vmatprep.subr.mxu0 0.0
    %254 = vmatpush1.msra.mxu0 %v226
    %255 = vmatprep.subr.mxu0 0.0
    %256 = vmatpush1.msra.mxu0 %v227
    %257 = vmatprep.subr.mxu0 0.0
    %258 = vmatpush1.msra.mxu0 %v228
    %259 = vmatprep.subr.mxu0 0.0
    %260 = vmatpush1.msra.mxu0 %v229
    %261 = vmatprep.subr.mxu0 0.0
    %262 = vmatpush1.msra.mxu0 %v230
    %263 = vmatprep.subr.mxu0 0.0
    %264 = vmatpush1.msra.mxu0 %v231
    %265 = vmatprep.subr.mxu0 0.0
    %266 = vmatpush1.msra.mxu0 %v232
    %267 = vmatprep.subr.mxu0 0.0
    %268 = vmatpush1.msra.mxu0 %v233
    %269 = vmatprep.subr.mxu0 0.0
    %270 = vmatpush1.msra.mxu0 %v234
    %271 = vmatprep.subr.mxu0 0.0
    %272 = vmatpush1.msra.mxu0 %v235
    %273 = vmatprep.subr.mxu0 0.0
    %274 = vmatpush1.msra.mxu0 %v236
    %275 = vmatprep.subr.mxu0 0.0
    %276 = vmatpush1.msra.mxu0 %v237
    %277 = vmatprep.subr.mxu0 0.0
    %278 = vmatpush1.msra.mxu0 0.0
    %279 = vmatprep.subr.mxu0 0.0
    %280 = vmatpush1.msra.mxu0 0.0
    %281 = vmatprep.subr.mxu0 0.0
    %282 = vmatpush1.msra.mxu0 0.0
    %283 = vmatprep.subr.mxu0 0.0
    %284 = vmatpush1.msra.mxu0 0.0
    %285 = vmatprep.subr.mxu0 0.0
    %286 = vmatpush1.msra.mxu0 0.0
    %287 = vmatprep.subr.mxu0 0.0
    %288 = vmatpush1.msra.mxu0 0.0
    %289 = vmatprep.subr.mxu0 0.0
    %290 = vmatpush1.msra.mxu0 0.0
    %291 = vmatprep.subr.mxu0 0.0
    %292 = vmatpush1.msra.mxu0 0.0
    %293 = vmatprep.subr.mxu0 0.0
    %294 = vmatpush1.msra.mxu0 0.0
    %295 = vmatprep.subr.mxu0 0.0
    %296 = vmatpush1.msra.mxu0 0.0
    %297 = vmatprep.subr.mxu0 0.0
    %298 = vmatpush1.msra.mxu0 0.0
    %299 = vmatprep.subr.mxu0 0.0
    %300 = vmatpush1.msra.mxu0 0.0
    %301 = vmatprep.subr.mxu0 0.0
    %302 = vmatpush1.msra.mxu0 0.0
    %303 = vmatprep.subr.mxu0 0.0
    %304 = vmatpush1.msra.mxu0 0.0
    %305 = vmatprep.subr.mxu0 0.0
    %306 = vmatpush1.msra.mxu0 0.0
    %307 = vmatprep.subr.mxu0 0.0
    %308 = vmatpush1.msra.mxu0 0.0
    %309 = vmatprep.mubr.f32.mxu0 0.0
    %310 = vmatmul.mubr.f32.gmra.mrb[0].mxu0 %v221
    %v311 = vpop.f32.mrb[0].mxu0
    %v312 = vadd.f32 %v243, %v311
    %v313 = vpop.f32.mrb[0].mxu0
    %314 = vdwg.mxu0
    %v315 = vtanh.pop %v312
    %vm316 = vcmask 130048
    %317 = vst.msk [vmem:[#allocation5] sm:$0xff] %vm316, %v315
    // Predicated region
    $region34: #{tpu_custom_call.1} parent=1 // pred_check
      _
    $region35: #{tpu_custom_call.1} parent=1 // pred_check_branch
      %319 = sbr.rel (0) target = $region37
    $region36: #{tpu_custom_call.1} parent=1 // pred_region
      %s321 = ssub.s32 128, 128
      %322 = vsyncadd [#allocation4], %s321
      %s324 = sshll.u32 [#allocation5], 4
      %s325 = int_to_ptr.vmem [resolvable:$true] %s324
      %327 = dma.vmem_to_hbm [thread:$0]  %s325, 128, %s7, [#allocation4]
    $region37: #{tpu_custom_call.1} parent=1 // pred_fallthru
      _
    // Predicated region
    $region38: #{tpu_custom_call.1} parent=1 // pred_check
      _
    $region39: #{tpu_custom_call.1} parent=1 // pred_check_branch
      %329 = sbr.rel (0) target = $region41
    $region40: #{tpu_custom_call.1} parent=1 // pred_region
      %330 = dma.done [#allocation4], 128
    $region41: #{tpu_custom_call.1} parent=1 // pred_fallthru
      _
    %331 = vsyncpa [#allocation3], 1
    %332 = vsyncpa [#allocation4], 1

</llo_original>
